<compile_context>
chip_gen: v5e
topology: v5e:2x2
jax: 0.10.0
libtpu: 0.0.40
codegen_flags: <defaults>
</compile_context>

<pallas_src>
import jax
import jax.numpy as jnp
from jax.experimental import pallas as pl
from jax.experimental.pallas import tpu as pltpu


_MIN_PALLAS_BYTES = 1 << 20  # below ~1 MiB the fixed launch cost dominates


def _identity_kernel(x_ref, o_ref):
    # SwinT.forward is literally `return x` — a pure copy.
    o_ref[...] = x_ref[...]


def _chip_tuning():
    """Return (target_block_bytes, vmem_limit_bytes) per TPU generation."""
    kind = ""
    try:
        kind = jax.devices()[0].device_kind.lower()
    except Exception:
        pass
    if "v6" in kind:
        # 128 MiB physical VMEM: 8 MiB blocks, 4 live buffers = 32 MiB << 64 MiB.
        return 8 * 1024 * 1024, 64 * 1024 * 1024
    if "v5" in kind:
        # 16 MiB scoped default; 32 MiB is the minimum for 4 x 4 MiB buffers.
        return 4 * 1024 * 1024, 32 * 1024 * 1024
    # v7x (64 MiB physical VMEM) and unknown chips: 6 MiB blocks,
    # 4 live buffers = 24 MiB, 48 MiB limit stays well under 64 MiB.
    return 6 * 1024 * 1024, 48 * 1024 * 1024


def _choose_layout(total):
    """Lane-dense (rows, lanes) layout; lanes a multiple of 128, <= 8192."""
    lanes = 128
    while (total % (lanes * 2) == 0 and lanes * 2 <= 8192
           and total // (lanes * 2) >= 8):
        lanes *= 2
    return total // lanes, lanes


def _choose_tile_rows(rows, lanes, itemsize, target_block_bytes):
    max_tile_rows = max(8, target_block_bytes // max(1, lanes * itemsize))
    max_tile_rows = max(8, (max_tile_rows // 8) * 8)        # sublane aligned
    if rows <= max_tile_rows:
        if rows >= 16:
            # Keep >=2 grid tiles so v7x's two TensorCores both get work;
            # one extra ~0.35us grid step is noise on v5e/v6e.
            half = (((rows + 1) // 2) + 7) // 8 * 8
            return min(max_tile_rows, half)
        return rows                                          # full extent
    return max_tile_rows


def _lane_dense_copy(x2d, tile_rows, vmem_limit_bytes):
    rows, lanes = x2d.shape
    grid = (pl.cdiv(rows, tile_rows),)
    return pl.pallas_call(
        _identity_kernel,
        out_shape=jax.ShapeDtypeStruct((rows, lanes), x2d.dtype),
        grid=grid,
        in_specs=[pl.BlockSpec((tile_rows, lanes), lambda i: (i, 0))],
        out_specs=pl.BlockSpec((tile_rows, lanes), lambda i: (i, 0)),
        # Under jit (+ donation of the outer argument) this aliases the
        # caller's HBM buffer: no fresh output allocation, no hidden copy.
        input_output_aliases={0: 0},
        compiler_params=pltpu.CompilerParams(
            dimension_semantics=("parallel",),  # v7x: 2 TCs split the tiles
            vmem_limit_bytes=vmem_limit_bytes,
        ),
    )(x2d)


def _identity_impl(x):
    shape, total = x.shape, x.size
    itemsize = jnp.dtype(x.dtype).itemsize
    target_block_bytes, vmem_limit_bytes = _chip_tuning()

    flat = x.reshape(total)
    pad = (-total) % 128
    if pad:
        # Lane-dense main body via pad-and-trim: never put a narrow trailing
        # dim (W=16, odd sizes, ...) on lanes — that wastes ~8x store bandwidth.
        flat = jnp.pad(flat, (0, pad))
    rows, lanes = _choose_layout(total + pad)
    tile_rows = _choose_tile_rows(rows, lanes, itemsize, target_block_bytes)

    out2d = _lane_dense_copy(flat.reshape(rows, lanes), tile_rows,
                             vmem_limit_bytes)
    out = out2d.reshape(total + pad)
    if pad:
        out = out[:total]
    return out.reshape(shape)


# Donated path: the alias inside pallas_call targets the caller's real buffer.
_identity_donated = jax.jit(_identity_impl, donate_argnums=0)
# Non-donated path (used when padding prevents a clean whole-buffer alias).
_identity_plain = jax.jit(_identity_impl)


def swin_t_forward(x, *, force_pallas=False, donate=True):
    """Identity forward pass of SwinT (reference forward is `return x`).

    Default path: return x untouched (zero cost — the faithful optimum).
    Pallas path: used for large tensors or when force_pallas=True.  When
    `donate=True` the input buffer is donated and must not be read afterwards.
    """
    if x.size == 0:
        return x
    total_bytes = x.size * jnp.dtype(x.dtype).itemsize
    if not force_pallas and total_bytes < _MIN_PALLAS_BYTES:
        # Small-input bypass: launch overhead would be 100% of the runtime.
        return x
    if donate and x.size % 128 == 0:
        return _identity_donated(x)
    return _identity_plain(x)


if __name__ == "__main__":
    key = jax.random.PRNGKey(0)
    shape, dtype = (2, 4, 16, 16), jnp.float32

    # Independent reference copy: the kernel input is donated, so `x` must
    # not be read after the Pallas call.
    x_ref = jax.random.normal(key, shape, dtype=dtype)
    x = jax.random.normal(key, shape, dtype=dtype)

    # Zero-cost path (the semantically faithful optimum: launch nothing).
    y_fast = swin_t_forward(x)
    assert y_fast is x

    # Pallas kernel path (forced — the 8 KiB demo input is below the bypass).
    y = swin_t_forward(x, force_pallas=True)   # donates x
    del x, y_fast                              # do not hold the donated buffer
    y = jax.block_until_ready(y)

    assert y.shape == x_ref.shape and y.dtype == x_ref.dtype
    assert bool(jnp.array_equal(y, x_ref))
    print("KERNEL_OK")
</pallas_src>

<mosaic_0001>
module attributes {stable_mosaic.version = 11 : i64} {
  func.func @_identity_kernel(%arg0: i32, %arg1: memref<8x256xf32, #tpu.memory_space<vmem>>, %arg2: memref<8x256xf32, #tpu.memory_space<vmem>>) attributes {dimension_semantics = [#tpu.dimension_semantics<parallel>], iteration_bounds = array<i64: 1>, scalar_prefetch = 0 : i64, scratch_operands = 0 : i64, tpu.core_type = #tpu.core_type<tc>, window_params = [{transform_indices = @transform_0, window_bounds = array<i64: 8, 256>}, {transform_indices = @transform_1, window_bounds = array<i64: 8, 256>}]} {
    %c0 = arith.constant 0 : index
    %c0_0 = arith.constant 0 : index
    %0 = vector.load %arg1[%c0, %c0_0] : memref<8x256xf32, #tpu.memory_space<vmem>>, vector<8x256xf32>
    %c0_1 = arith.constant 0 : index
    %c0_2 = arith.constant 0 : index
    %1 = vector.load %arg2[%c0_1, %c0_2] : memref<8x256xf32, #tpu.memory_space<vmem>>, vector<8x256xf32>
    tpu.vector_store %arg2[%c0_1, %c0_2], %0 {strides = array<i32>} : memref<8x256xf32, #tpu.memory_space<vmem>>, vector<8x256xf32>,
    return
  }
  func.func @transform_0(%arg0: i32) -> (i32, i32) {
    %c0_i32 = arith.constant 0 : i32
    %c0_i32_0 = arith.constant 0 : i32
    return %arg0, %c0_i32 : i32, i32
  }
  func.func @transform_1(%arg0: i32) -> (i32, i32) {
    %c0_i32 = arith.constant 0 : i32
    %c0_i32_0 = arith.constant 0 : i32
    return %arg0, %c0_i32 : i32, i32
  }
}

</mosaic_0001>

<llo_original>
// kernel: _identity_impl.1
$region0: #{_identity_impl.1}
  #allocation0 [shape = 'u32[]', space=smem, size = 0x4, offset = 0x4, fixed_abs, tag = 'smem constant byte address 0x4 - core index']
  #allocation1 [shape = 'u32[72,128]{1,0:T(1,128)}', space=vmem, size = 0x9000, scoped, tag = 'internal scratch']
  %s0 = inlined_call_operand.vmem [shape: f32[8,256], index: 0, kind: input, shape index: {}, may-alias: {0,1}]
  %s1 = inlined_call_operand.vmem [shape: f32[8,256], index: 1, kind: output, shape index: {}, may-alias: {0,1}]
  %s2 = sld [smem:[#allocation0]]
  $region14: #{_identity_impl.1} parent=0
    _
  %s4 = ssub.s32 1, %s2
  %s5 = scalar_select 0, %s4, %s2
  // Predicated region
  $region2: #{_identity_impl.1} parent=0 // pred_check
    _
  $region3: #{_identity_impl.1} parent=0 // pred_check_branch
    %7 = sbr.rel (0) target = $region5
  $region4: #{_identity_impl.1} parent=0 // pred_region
    _
  $region5: #{_identity_impl.1} parent=0 // pred_fallthru
    _
  %v8 = vld [vmem:[%s0] sm:$0xff]
  %v9 = vld [vmem:[%s0 + $0x8] sm:$0xff]
  %10 = vst [vmem:[%s1] sm:$0xff] %v8
  %11 = vst [vmem:[%s1 + $0x8] sm:$0xff] %v9
  // Predicated region
  $region6: #{_identity_impl.1} parent=0 // pred_check
    _
  $region7: #{_identity_impl.1} parent=0 // pred_check_branch
    %13 = sbr.rel (0) target = $region9
  $region8: #{_identity_impl.1} parent=0 // pred_region
    _
  $region9: #{_identity_impl.1} parent=0 // pred_fallthru
    _
  // Predicated region
  $region10: #{_identity_impl.1} parent=0 // pred_check
    _
  $region11: #{_identity_impl.1} parent=0 // pred_check_branch
    %15 = sbr.rel (0) target = $region13
  $region12: #{_identity_impl.1} parent=0 // pred_region
    _
  $region13: #{_identity_impl.1} parent=0 // pred_fallthru
    _

</llo_original>
